<compile_context>
chip_gen: v7x
topology: tpu7x:2x2x1
jax: 0.10.0
libtpu: 0.0.40
codegen_flags: <defaults>
</compile_context>

<pallas_src>
import functools

import jax
import jax.numpy as jnp
from jax.experimental import pallas as pl
from jax.experimental.pallas import tpu as pltpu


# Spatial tile size (lane axis).  ~8K columns keeps live VMEM (double-buffered bf16 patch
# block + f32 SiLU temps) around 7-10 MiB at EfficientNet-B4 stem scale, safe on v7x
# (64 MiB VMEM) and far below v5e/v6e (128 MiB).
TP_MAX = 8192


def _round_up(x, m):
    return (x + m - 1) // m * m


def _pick_vmem_limit_bytes():
    # Use as much scoped VMEM as the chip can safely give (v5e/v6e: 128 MiB physical,
    # v7x: 64 MiB), leaving headroom for Mosaic internal scratch.
    try:
        cap = int(getattr(pltpu.get_tpu_info(), "vmem_capacity_bytes", 64 << 20))
    except Exception:
        cap = 64 << 20
    return int(min(max(cap - (16 << 20), 32 << 20), 96 << 20))


# ---------------------------------------------------------------------------
# Fused kernel: per (batch, P-tile) grid step
#   f2  = SiLU(W_blockdiag @ patches_stacked_tile + b_stacked)   (2C, TP)  bf16 MXU, f32 acc
#   f   = f2[:C] + f2[C:]                                        (C, TP)   torch.add
#   acc += sum_over_columns(f)                                   (C, 1)    pooled-sum (VMEM)
#   at last P-tile: subtract padded-column correction, average, FC -> (1, N) logits to HBM.
# NOTE: the output block is written only on the last P tile and relies on output residency
# across the 'arbitrary' p axis (same block index for all p) — do not mark p 'parallel'.
# ---------------------------------------------------------------------------
def fused_stem_head_kernel(pab_ref, w_ref, b_ref, fcw_ref, fcb_ref, out_ref,
                           acc_ref, *, c, p_true, p_pad):
    pt = pl.program_id(1)

    @pl.when(pt == 0)
    def _init():
        acc_ref[...] = jnp.zeros_like(acc_ref)

    # Both stems in one MXU pass (block-diagonal weight, stacked patches).
    f2 = jnp.dot(w_ref[...], pab_ref[0], preferred_element_type=jnp.float32)  # (2C, TP)
    f2 = f2 + b_ref[...]
    f2 = f2 * jax.nn.sigmoid(f2)          # SiLU (f32 epilogue; v5e has no bf16 VPU/EUP)
    f = f2[:c] + f2[c:]                   # torch.add(mels, mfcc) -> (C, TP)

    # Pooled-sum accumulation over ALL columns (padded columns included; their exact
    # contribution SiLU(ba)+SiLU(bb) per channel is subtracted once at finalize, so the
    # inner loop carries no iota/where masking).
    acc_ref[...] += jnp.sum(f, axis=1, keepdims=True)

    @pl.when(pt == pl.num_programs(1) - 1)
    def _finalize():
        pooled_sum = acc_ref[...]
        npad = p_pad - p_true                                   # static Python int
        if npad > 0:
            bs = b_ref[...] * jax.nn.sigmoid(b_ref[...])        # (2C, 1)
            pooled_sum = pooled_sum - (bs[:c] + bs[c:]) * float(npad)
        pooled = pooled_sum * (1.0 / p_true)                    # global average pool (C, 1)
        # FC head: out[n] = sum_c pooled[c] * fcw[c, n] + fcb[n]   (tiny, once per batch)
        logits = jnp.sum(pooled * fcw_ref[...], axis=0, keepdims=True) + fcb_ref[...]
        out_ref[0] = logits                                     # (1, N)


def fused_stem_head(pab, w2, b2, fcw, fcb, *, p_true, tp):
    B, KK2, P_pad = pab.shape
    C2 = w2.shape[0]
    C = C2 // 2
    N = fcw.shape[1]
    n_pt = P_pad // tp

    kernel = functools.partial(fused_stem_head_kernel, c=C, p_true=p_true, p_pad=P_pad)
    out = pl.pallas_call(
        kernel,
        out_shape=jax.ShapeDtypeStruct((B, 1, N), jnp.float32),
        grid_spec=pltpu.PrefetchScalarGridSpec(
            num_scalar_prefetch=0,
            grid=(B, n_pt),
            in_specs=[
                pl.BlockSpec((1, KK2, tp), lambda b, p: (b, 0, p)),   # stacked patches (bf16)
                pl.BlockSpec((C2, KK2), lambda b, p: (0, 0)),         # block-diag weight (bf16)
                pl.BlockSpec((C2, 1), lambda b, p: (0, 0)),           # stacked BN bias (f32)
                pl.BlockSpec((C, N), lambda b, p: (0, 0)),            # FC weight (f32)
                pl.BlockSpec((1, N), lambda b, p: (0, 0)),            # FC bias (f32)
            ],
            out_specs=pl.BlockSpec((1, 1, N), lambda b, p: (b, 0, 0)),
            scratch_shapes=[pltpu.VMEM((C, 1), jnp.float32)],         # pooled-sum acc
        ),
        compiler_params=pltpu.CompilerParams(
            dimension_semantics=("parallel", "arbitrary"),
            vmem_limit_bytes=_pick_vmem_limit_bytes(),
        ),
    )(pab, w2, b2, fcw, fcb)
    return out[:, 0, :]


# ---------------------------------------------------------------------------
# Glue: NCHW -> transposed im2col patches (B, k*k*Cin, OH*OW), conv stride 2, pad 1.
# Casts to bf16 BEFORE extraction and emits the (B, KKC, P) layout directly (no trailing
# transpose).  Tap ordering along KKC: (kh, kw, cin) — matches the (kkc, C) weight layout.
# ---------------------------------------------------------------------------
def extract_patches_t(x_nchw, k=3, stride=2, pad=1, dtype=jnp.bfloat16):
    x = x_nchw.astype(dtype)
    x = jnp.pad(x, ((0, 0), (0, 0), (pad, pad), (pad, pad)))
    B, C, H, W = x.shape
    oh = (H - k) // stride + 1
    ow = (W - k) // stride + 1
    pieces = []
    for di in range(k):
        for dj in range(k):
            pieces.append(
                x[:, :, di:di + stride * oh:stride, dj:dj + stride * ow:stride])
    p = jnp.stack(pieces, axis=1)                  # (B, k*k, Cin, oh, ow)
    return p.reshape(B, k * k * C, oh * ow)        # (B, KKC, P)  — P on the lane axis


@jax.jit
def ensemble_forward(mels, mfcc, params):
    pa = extract_patches_t(mels)
    pb = extract_patches_t(mfcc)
    B, KKC, P = pa.shape
    C = params["wa"].shape[1]

    kkc_pad = _round_up(KKC, 16)                   # bf16 sublane packing
    tp = min(TP_MAX, _round_up(P, 128))            # lane-dense spatial tile (full-P if it fits)
    p_pad = _round_up(P, tp)

    pad_spec = ((0, 0), (0, kkc_pad - KKC), (0, p_pad - P))
    pa = jnp.pad(pa, pad_spec)
    pb = jnp.pad(pb, pad_spec)
    pab = jnp.concatenate([pa, pb], axis=1)        # (B, 2*KKCp, P_pad), bf16

    # Fold eval-mode BN scale into the conv weights; build the block-diagonal (2C, 2*KKCp)
    # weight so both stems run in one MXU pass; stack the BN biases to (2C, 1).
    wa_t = jnp.pad((params["wa"] * params["sa"]).T, ((0, 0), (0, kkc_pad - KKC)))
    wb_t = jnp.pad((params["wb"] * params["sb"]).T, ((0, 0), (0, kkc_pad - KKC)))
    w2 = jnp.zeros((2 * C, 2 * kkc_pad), jnp.float32)
    w2 = w2.at[:C, :kkc_pad].set(wa_t).at[C:, kkc_pad:].set(wb_t).astype(jnp.bfloat16)
    b2 = jnp.concatenate([params["ba"].T, params["bb"].T], axis=0)   # (2C, 1), f32

    return fused_stem_head(pab, w2, b2, params["fcw"], params["fcb"],
                           p_true=P, tp=tp)


# ---------------------------------------------------------------------------
# Pure-JAX reference (mimics the kernel's bf16 MXU operands / f32 accumulate).
# ---------------------------------------------------------------------------
def reference(mels, mfcc, params, k=3):
    hi = jax.lax.Precision.HIGHEST

    def branch(x, w_flat, scale, bias):
        kkc, cstem = w_flat.shape
        cin = kkc // (k * k)
        w = w_flat * scale                                      # fold BN scale (f32)
        w = w.astype(jnp.bfloat16).astype(jnp.float32)          # bf16 MXU operands
        x = x.astype(jnp.bfloat16).astype(jnp.float32)
        w = w.reshape(k, k, cin, cstem).transpose(3, 2, 0, 1)   # OIHW
        y = jax.lax.conv_general_dilated(
            x, w, window_strides=(2, 2), padding=((1, 1), (1, 1)),
            dimension_numbers=("NCHW", "OIHW", "NCHW"), precision=hi)
        y = y + bias[0][None, :, None, None]
        return y * jax.nn.sigmoid(y)

    fa = branch(mels, params["wa"], params["sa"], params["ba"])
    fb = branch(mfcc, params["wb"], params["sb"], params["bb"])
    add = fa + fb
    pooled = jnp.mean(add, axis=(2, 3))
    return jnp.dot(pooled, params["fcw"], precision=hi) + params["fcb"]


if __name__ == "__main__":
    # Small shapes consistent with the forward: two NCHW image-like inputs.
    B, CIN, H, W = 2, 3, 16, 16
    CSTEM, NUM_CLASSES, K = 32, 7, 3

    key = jax.random.PRNGKey(0)
    ks = jax.random.split(key, 12)

    mels = jax.random.normal(ks[0], (B, CIN, H, W), jnp.float32)
    mfcc = jax.random.normal(ks[1], (B, CIN, H, W), jnp.float32)

    # Deterministic parameter init (synthetic, no checkpoint).
    kkc = K * K * CIN
    wa = jax.random.normal(ks[2], (kkc, CSTEM), jnp.float32) * 0.1
    wb = jax.random.normal(ks[3], (kkc, CSTEM), jnp.float32) * 0.1
    # Eval-mode BatchNorm folded into (scale, bias).
    gamma_a = 1.0 + 0.1 * jax.random.normal(ks[4], (CSTEM,), jnp.float32)
    beta_a = 0.1 * jax.random.normal(ks[5], (CSTEM,), jnp.float32)
    gamma_b = 1.0 + 0.1 * jax.random.normal(ks[6], (CSTEM,), jnp.float32)
    beta_b = 0.1 * jax.random.normal(ks[7], (CSTEM,), jnp.float32)
    mean_a = 0.05 * jax.random.normal(ks[8], (CSTEM,), jnp.float32)
    var_a = 1.0 + 0.1 * jnp.abs(jax.random.normal(ks[9], (CSTEM,), jnp.float32))
    mean_b = 0.05 * jax.random.normal(ks[10], (CSTEM,), jnp.float32)
    var_b = 1.0 + 0.1 * jnp.abs(jax.random.normal(ks[11], (CSTEM,), jnp.float32))
    eps = 1e-5
    sa = (gamma_a / jnp.sqrt(var_a + eps))[None, :]
    ba = (beta_a - mean_a * gamma_a / jnp.sqrt(var_a + eps))[None, :]
    sb = (gamma_b / jnp.sqrt(var_b + eps))[None, :]
    bb = (beta_b - mean_b * gamma_b / jnp.sqrt(var_b + eps))[None, :]

    kfc = jax.random.split(jax.random.PRNGKey(1), 2)
    fcw = jax.random.normal(kfc[0], (CSTEM, NUM_CLASSES), jnp.float32) * 0.1
    fcb = jax.random.normal(kfc[1], (1, NUM_CLASSES), jnp.float32) * 0.1

    params = dict(wa=wa, wb=wb, sa=sa, ba=ba, sb=sb, bb=bb, fcw=fcw, fcb=fcb)

    out = ensemble_forward(mels, mfcc, params)
    out = jax.block_until_ready(out)

    ref = reference(mels, mfcc, params)
    assert out.shape == (B, NUM_CLASSES), out.shape
    assert jnp.allclose(out, ref, rtol=1e-3, atol=1e-3), (out, ref)

    print("KERNEL_OK")
</pallas_src>

<mosaic_0001>
module attributes {stable_mosaic.version = 11 : i64} {
  func.func @fused_stem_head_kernel(%arg0: i32, %arg1: i32, %arg2: memref<1x64x128xbf16, #tpu.memory_space<vmem>>, %arg3: memref<64x64xbf16, #tpu.memory_space<vmem>>, %arg4: memref<64x1xf32, #tpu.memory_space<vmem>>, %arg5: memref<32x7xf32, #tpu.memory_space<vmem>>, %arg6: memref<1x7xf32, #tpu.memory_space<vmem>>, %arg7: memref<1x1x7xf32, #tpu.memory_space<vmem>>, %arg8: memref<32x1xf32, #tpu.memory_space<vmem>>) attributes {dimension_semantics = [#tpu.dimension_semantics<parallel>, #tpu.dimension_semantics<arbitrary>], iteration_bounds = array<i64: 2, 1>, scalar_prefetch = 0 : i64, scratch_operands = 1 : i64, tpu.core_type = #tpu.core_type<tc>, window_params = [{transform_indices = @transform_0, window_bounds = array<i64: 1, 64, 128>}, {pipeline_mode = #tpu.pipeline_mode<synchronous>, transform_indices = @transform_1, window_bounds = array<i64: 64, 64>}, {pipeline_mode = #tpu.pipeline_mode<synchronous>, transform_indices = @transform_2, window_bounds = array<i64: 64, 1>}, {pipeline_mode = #tpu.pipeline_mode<synchronous>, transform_indices = @transform_3, window_bounds = array<i64: 32, 7>}, {pipeline_mode = #tpu.pipeline_mode<synchronous>, transform_indices = @transform_4, window_bounds = array<i64: 1, 7>}, {transform_indices = @transform_5, window_bounds = array<i64: 1, 1, 7>}]} {
    %c0_i32 = arith.constant 0 : i32
    %0 = arith.cmpi eq, %arg1, %c0_i32 : i32
    %1 = arith.extui %0 : i1 to i32
    %c0_i32_0 = arith.constant 0 : i32
    %2 = arith.cmpi ne, %1, %c0_i32_0 : i32
    scf.if %2 {
      %cst_15 = arith.constant 0.000000e+00 : f32
      %27 = vector.broadcast %cst_15 : f32 to vector<32x1xf32>
      %c0_16 = arith.constant 0 : index
      %c0_17 = arith.constant 0 : index
      %28 = vector.load %arg8[%c0_16, %c0_17] : memref<32x1xf32, #tpu.memory_space<vmem>>, vector<32x1xf32>
      tpu.vector_store %arg8[%c0_16, %c0_17], %27 {strides = array<i32>} : memref<32x1xf32, #tpu.memory_space<vmem>>, vector<32x1xf32>,
    } else {
    }
    %c0 = arith.constant 0 : index
    %c0_1 = arith.constant 0 : index
    %3 = vector.load %arg3[%c0, %c0_1] : memref<64x64xbf16, #tpu.memory_space<vmem>>, vector<64x64xbf16>
    %c0_2 = arith.constant 0 : index
    %c0_3 = arith.constant 0 : index
    %c0_4 = arith.constant 0 : index
    %4 = vector.load %arg2[%c0_2, %c0_3, %c0_4] : memref<1x64x128xbf16, #tpu.memory_space<vmem>>, vector<1x64x128xbf16>
    %5 = vector.shape_cast %4 : vector<1x64x128xbf16> to vector<64x128xbf16>
    %cst = arith.constant dense<0.000000e+00> : vector<64x128xf32>
    %6 = tpu.matmul %3, %5, %cst {dimension_numbers = #tpu.dot_dimension_numbers<[1], [0], [0], [1], [0, 0, 1, 1], [], []>} : vector<64x64xbf16>, vector<64x128xbf16>, vector<64x128xf32> -> vector<64x128xf32>
    %c0_5 = arith.constant 0 : index
    %c0_6 = arith.constant 0 : index
    %7 = vector.load %arg4[%c0_5, %c0_6] : memref<64x1xf32, #tpu.memory_space<vmem>>, vector<64x1xf32>
    %8 = vector.broadcast %7 : vector<64x1xf32> to vector<64x128xf32>
    %9 = arith.addf %6, %8 : vector<64x128xf32>
    %10 = arith.negf %9 : vector<64x128xf32>
    %11 = math.exp %10 : vector<64x128xf32>
    %cst_7 = arith.constant 1.000000e+00 : f32
    %12 = vector.broadcast %cst_7 : f32 to vector<64x128xf32>
    %13 = arith.addf %12, %11 : vector<64x128xf32>
    %14 = arith.divf %12, %13 : vector<64x128xf32>
    %15 = arith.mulf %9, %14 : vector<64x128xf32>
    %16 = vector.extract_strided_slice %15 {offsets = [0, 0], sizes = [32, 128], strides = [1, 1]} : vector<64x128xf32> to vector<32x128xf32>
    %17 = vector.extract_strided_slice %15 {offsets = [32, 0], sizes = [32, 128], strides = [1, 1]} : vector<64x128xf32> to vector<32x128xf32>
    %18 = arith.addf %16, %17 : vector<32x128xf32>
    %c0_8 = arith.constant 0 : index
    %c0_9 = arith.constant 0 : index
    %19 = vector.load %arg8[%c0_8, %c0_9] : memref<32x1xf32, #tpu.memory_space<vmem>>, vector<32x1xf32>
    %cst_10 = arith.constant dense<0.000000e+00> : vector<32xf32>
    %20 = vector.multi_reduction <add>, %18, %cst_10 [1] : vector<32x128xf32> to vector<32xf32>
    %21 = vector.shape_cast %20 : vector<32xf32> to vector<32x1xf32>
    %22 = arith.addf %19, %21 : vector<32x1xf32>
    %c0_11 = arith.constant 0 : index
    %c0_12 = arith.constant 0 : index
    %23 = vector.load %arg8[%c0_11, %c0_12] : memref<32x1xf32, #tpu.memory_space<vmem>>, vector<32x1xf32>
    tpu.vector_store %arg8[%c0_11, %c0_12], %22 {strides = array<i32>} : memref<32x1xf32, #tpu.memory_space<vmem>>, vector<32x1xf32>,
    %c0_i32_13 = arith.constant 0 : i32
    %24 = arith.cmpi eq, %arg1, %c0_i32_13 : i32
    %25 = arith.extui %24 : i1 to i32
    %c0_i32_14 = arith.constant 0 : i32
    %26 = arith.cmpi ne, %25, %c0_i32_14 : i32
    scf.if %26 {
      %c0_15 = arith.constant 0 : index
      %c0_16 = arith.constant 0 : index
      %27 = vector.load %arg8[%c0_15, %c0_16] : memref<32x1xf32, #tpu.memory_space<vmem>>, vector<32x1xf32>
      %c0_17 = arith.constant 0 : index
      %c0_18 = arith.constant 0 : index
      %28 = vector.load %arg4[%c0_17, %c0_18] : memref<64x1xf32, #tpu.memory_space<vmem>>, vector<64x1xf32>
      %c0_19 = arith.constant 0 : index
      %c0_20 = arith.constant 0 : index
      %29 = vector.load %arg4[%c0_19, %c0_20] : memref<64x1xf32, #tpu.memory_space<vmem>>, vector<64x1xf32>
      %30 = arith.negf %29 : vector<64x1xf32>
      %31 = math.exp %30 : vector<64x1xf32>
      %cst_21 = arith.constant 1.000000e+00 : f32
      %32 = vector.broadcast %cst_21 : f32 to vector<64x1xf32>
      %33 = arith.addf %32, %31 : vector<64x1xf32>
      %34 = arith.divf %32, %33 : vector<64x1xf32>
      %35 = arith.mulf %28, %34 : vector<64x1xf32>
      %36 = vector.extract_strided_slice %35 {offsets = [0, 0], sizes = [32, 1], strides = [1, 1]} : vector<64x1xf32> to vector<32x1xf32>
      %37 = vector.extract_strided_slice %35 {offsets = [32, 0], sizes = [32, 1], strides = [1, 1]} : vector<64x1xf32> to vector<32x1xf32>
      %38 = arith.addf %36, %37 : vector<32x1xf32>
      %cst_22 = arith.constant 6.400000e+01 : f32
      %39 = vector.broadcast %cst_22 : f32 to vector<32x1xf32>
      %40 = arith.mulf %38, %39 : vector<32x1xf32>
      %41 = arith.subf %27, %40 : vector<32x1xf32>
      %cst_23 = arith.constant 1.562500e-02 : f32
      %42 = vector.broadcast %cst_23 : f32 to vector<32x1xf32>
      %43 = arith.mulf %41, %42 : vector<32x1xf32>
      %c0_24 = arith.constant 0 : index
      %c0_25 = arith.constant 0 : index
      %44 = vector.load %arg5[%c0_24, %c0_25] : memref<32x7xf32, #tpu.memory_space<vmem>>, vector<32x7xf32>
      %45 = vector.broadcast %43 : vector<32x1xf32> to vector<32x7xf32>
      %46 = arith.mulf %45, %44 : vector<32x7xf32>
      %cst_26 = arith.constant dense<0.000000e+00> : vector<7xf32>
      %47 = vector.multi_reduction <add>, %46, %cst_26 [0] : vector<32x7xf32> to vector<7xf32>
      %48 = vector.shape_cast %47 : vector<7xf32> to vector<1x7xf32>
      %c0_27 = arith.constant 0 : index
      %c0_28 = arith.constant 0 : index
      %49 = vector.load %arg6[%c0_27, %c0_28] : memref<1x7xf32, #tpu.memory_space<vmem>>, vector<1x7xf32>
      %50 = arith.addf %48, %49 : vector<1x7xf32>
      %c0_29 = arith.constant 0 : index
      %c0_30 = arith.constant 0 : index
      %c0_31 = arith.constant 0 : index
      %51 = vector.load %arg7[%c0_29, %c0_30, %c0_31] : memref<1x1x7xf32, #tpu.memory_space<vmem>>, vector<1x1x7xf32>
      %52 = vector.shape_cast %51 : vector<1x1x7xf32> to vector<1x7xf32>
      %53 = vector.shape_cast %50 : vector<1x7xf32> to vector<1x1x7xf32>
      tpu.vector_store %arg7[%c0_29, %c0_30, %c0_31], %53 {strides = array<i32>} : memref<1x1x7xf32, #tpu.memory_space<vmem>>, vector<1x1x7xf32>,
    } else {
    }
    return
  }
  func.func @transform_0(%arg0: i32, %arg1: i32) -> (i32, i32, i32) {
    %c0_i32 = arith.constant 0 : i32
    %c0_i32_0 = arith.constant 0 : i32
    return %arg0, %c0_i32, %arg1 : i32, i32, i32
  }
  func.func @transform_1(%arg0: i32, %arg1: i32) -> (i32, i32) {
    %c0_i32 = arith.constant 0 : i32
    %c0_i32_0 = arith.constant 0 : i32
    %c0_i32_1 = arith.constant 0 : i32
    return %c0_i32, %c0_i32_0 : i32, i32
  }
  func.func @transform_2(%arg0: i32, %arg1: i32) -> (i32, i32) {
    %c0_i32 = arith.constant 0 : i32
    %c0_i32_0 = arith.constant 0 : i32
    %c0_i32_1 = arith.constant 0 : i32
    return %c0_i32, %c0_i32_0 : i32, i32
  }
  func.func @transform_3(%arg0: i32, %arg1: i32) -> (i32, i32) {
    %c0_i32 = arith.constant 0 : i32
    %c0_i32_0 = arith.constant 0 : i32
    %c0_i32_1 = arith.constant 0 : i32
    return %c0_i32, %c0_i32_0 : i32, i32
  }
  func.func @transform_4(%arg0: i32, %arg1: i32) -> (i32, i32) {
    %c0_i32 = arith.constant 0 : i32
    %c0_i32_0 = arith.constant 0 : i32
    %c0_i32_1 = arith.constant 0 : i32
    return %c0_i32, %c0_i32_0 : i32, i32
  }
  func.func @transform_5(%arg0: i32, %arg1: i32) -> (i32, i32, i32) {
    %c0_i32 = arith.constant 0 : i32
    %c0_i32_0 = arith.constant 0 : i32
    %c0_i32_1 = arith.constant 0 : i32
    return %arg0, %c0_i32, %c0_i32_0 : i32, i32, i32
  }
}

</mosaic_0001>

<llo_original>
// kernel: ensemble_forward.1
$region0: #{ensemble_forward.1}
  #allocation0 [shape = 'u32[]', space=smem, size = 0x4, offset = 0x4, fixed_abs, tag = 'smem constant byte address 0x4 - core index']
  #allocation1 [shape = 'u32[144,128]{1,0:T(1,128)}', space=vmem, size = 0x12000, scoped, tag = 'internal scratch']
  #allocation2 [shape = 'f32[32,1]{1,0:T(8,128)}', space=vmem, size = 0x4000, scoped, tag = 'scratch operand']
  %s0 = inlined_call_operand.vmem [shape: bf16[2,64,128], index: 0, kind: input, shape index: {}]
  %s1 = inlined_call_operand.vmem [shape: bf16[64,64], index: 1, kind: input, shape index: {}]
  %s2 = inlined_call_operand.vmem [shape: f32[64,1], index: 2, kind: input, shape index: {}]
  %s3 = inlined_call_operand.vmem [shape: f32[32,7], index: 3, kind: input, shape index: {}]
  %s4 = inlined_call_operand.vmem [shape: f32[1,7], index: 4, kind: input, shape index: {}]
  %s5 = inlined_call_operand.hbm [shape: f32[2,1,7], index: 5, kind: output, shape index: {}]
  %s6 = sld [smem:[#allocation0]]
  $region61: #{ensemble_forward.1} parent=0
    _
  %s8 = ssub.s32 1, %s6
  %s9 = scalar_select 0, %s8, %s6
  $region1: #{ensemble_forward.1} parent=0
    #allocation3 [shape = 'u8[1024]{0}', space=vmem, size = 0x400, scoped, tag = 'output window, operand 0']
    #allocation4 [shape = 's32[2]{0}', space=sflag, size = 0x8, scoped, tag = 'scoped memory for ensemble_forward.1']
    %10 = vsyncpa [#allocation4], 0
    %s11 = scalar_lea.sflag [#allocation4], 1
    %12 = vsyncpa %s11, 0
    loop: start=0, step=1, limit=4
    $region2: #{ensemble_forward.1} parent=1 // loop_pre_header
      _
    $region3: #{ensemble_forward.1} parent=1 // loop_header
      %s14 = sphi 0, %s18
      %p15 = scmp.ge.s32.totalorder %s14, 4
      %s21 = sphi 0, %s33
      %s22 = sphi 0, %s29
      %s23 = sphi 0, %s21
      %s24 = sphi 0, %s22
      %s25 = sphi 0, %s23
      %s26 = sphi 0, %s24
      %s38 = sphi 0, %s40
      %s41 = sphi 0, %s38
      %s42 = sphi 0, %s41
      %s58 = sphi 0, %s42
      %s62 = sphi 0, %s62
      %s64 = sphi 0, %s62
      %s65 = sphi 0, %s64
      %s79 = sphi 0, %s65
      %s83 = sphi 0, %s83
      %s85 = sphi 0, %s83
      %s86 = sphi 0, %s85
      %s100 = sphi 0, %s86
      %s104 = sphi 0, %s104
      %s106 = sphi 0, %s104
      %s107 = sphi 0, %s106
      %s121 = sphi 0, %s107
      %s125 = sphi 0, %s125
      %s127 = sphi 0, %s125
      %s128 = sphi 0, %s127
      %s142 = sphi 0, %s128
      %s148 = sphi 0, %s150
      %s151 = sphi 0, %s148
      %s152 = sphi 0, %s151
      %s168 = sphi 0, %s152
    $region4: #{ensemble_forward.1} parent=1 // loop_header_branch
      %17 = sbr.rel (%p15) target = $region8
    $region5: #{ensemble_forward.1} parent=1 // loop_body
      %s19 = ssub.s32 %s14, 1
      %s20 = ssub.s32 %s14, 2
      %s27 = sadd.s32 1, %s22
      %p28 = scmp.ge.s32.totalorder %s27, 1
      %s29 = scalar_select %p28, 0, %s27
      %s30 = sadd.s32 1, %s21
      %s31 = scalar_select %p28, %s30, %s21
      %p32 = scmp.ge.s32.totalorder %s31, 2
      %s33 = scalar_select %p32, 0, %s31
      %s34 = ssub.s32 %s21, %s33
      %s35 = ssub.s32 %s22, %s29
      %s36 = sor.u32 %s34, %s35
      %p37 = scmp.eq.s32.totalorder %s36, 0
      %s39 = sadd.s32 %s38, 1
      %s40 = scalar_select %p37, %s38, %s39
      %p43 = pneg %p37
      %p44 = scmp.eq.s32.totalorder %s14, 1
      %p45 = por %p43, %p44
      %p46 = scmp.ne.s32.totalorder %s38, %s41
      %p47 = scmp.eq.s32.totalorder %s14, 0
      %p48 = por %p46, %p47
      %p49 = scmp.ne.s32.totalorder %s38, %s41
      %p50 = scmp.eq.s32.totalorder %s19, 1
      %p51 = por %p49, %p50
      %p52 = scmp.ne.s32.totalorder %s41, %s42
      %p53 = scmp.eq.s32.totalorder %s19, 0
      %p54 = por %p52, %p53
      %p55 = scmp.ne.s32.totalorder %s41, %s42
      %p56 = scmp.eq.s32.totalorder %s20, 1
      %p57 = por %p55, %p56
      %p59 = scmp.ne.s32.totalorder %s42, %s58
      %p60 = scmp.eq.s32.totalorder %s20, 0
      %p61 = por %p59, %p60
      %s63 = sadd.s32 %s62, 1
      %p66 = scmp.eq.s32.totalorder %s14, 1
      %p67 = scmp.ne.s32.totalorder %s62, %s64
      %p68 = scmp.eq.s32.totalorder %s14, 0
      %p69 = por %p67, %p68
      %p70 = scmp.ne.s32.totalorder %s62, %s64
      %p71 = scmp.eq.s32.totalorder %s19, 1
      %p72 = por %p70, %p71
      %p73 = scmp.ne.s32.totalorder %s64, %s65
      %p74 = scmp.eq.s32.totalorder %s19, 0
      %p75 = por %p73, %p74
      %p76 = scmp.ne.s32.totalorder %s64, %s65
      %p77 = scmp.eq.s32.totalorder %s20, 1
      %p78 = por %p76, %p77
      %p80 = scmp.ne.s32.totalorder %s65, %s79
      %p81 = scmp.eq.s32.totalorder %s20, 0
      %p82 = por %p80, %p81
      %s84 = sadd.s32 %s83, 1
      %p87 = scmp.eq.s32.totalorder %s14, 1
      %p88 = scmp.ne.s32.totalorder %s83, %s85
      %p89 = scmp.eq.s32.totalorder %s14, 0
      %p90 = por %p88, %p89
      %p91 = scmp.ne.s32.totalorder %s83, %s85
      %p92 = scmp.eq.s32.totalorder %s19, 1
      %p93 = por %p91, %p92
      %p94 = scmp.ne.s32.totalorder %s85, %s86
      %p95 = scmp.eq.s32.totalorder %s19, 0
      %p96 = por %p94, %p95
      %p97 = scmp.ne.s32.totalorder %s85, %s86
      %p98 = scmp.eq.s32.totalorder %s20, 1
      %p99 = por %p97, %p98
      %p101 = scmp.ne.s32.totalorder %s86, %s100
      %p102 = scmp.eq.s32.totalorder %s20, 0
      %p103 = por %p101, %p102
      %s105 = sadd.s32 %s104, 1
      %p108 = scmp.eq.s32.totalorder %s14, 1
      %p109 = scmp.ne.s32.totalorder %s104, %s106
      %p110 = scmp.eq.s32.totalorder %s14, 0
      %p111 = por %p109, %p110
      %p112 = scmp.ne.s32.totalorder %s104, %s106
      %p113 = scmp.eq.s32.totalorder %s19, 1
      %p114 = por %p112, %p113
      %p115 = scmp.ne.s32.totalorder %s106, %s107
      %p116 = scmp.eq.s32.totalorder %s19, 0
      %p117 = por %p115, %p116
      %p118 = scmp.ne.s32.totalorder %s106, %s107
      %p119 = scmp.eq.s32.totalorder %s20, 1
      %p120 = por %p118, %p119
      %p122 = scmp.ne.s32.totalorder %s107, %s121
      %p123 = scmp.eq.s32.totalorder %s20, 0
      %p124 = por %p122, %p123
      %s126 = sadd.s32 %s125, 1
      %p129 = scmp.eq.s32.totalorder %s14, 1
      %p130 = scmp.ne.s32.totalorder %s125, %s127
      %p131 = scmp.eq.s32.totalorder %s14, 0
      %p132 = por %p130, %p131
      %p133 = scmp.ne.s32.totalorder %s125, %s127
      %p134 = scmp.eq.s32.totalorder %s19, 1
      %p135 = por %p133, %p134
      %p136 = scmp.ne.s32.totalorder %s127, %s128
      %p137 = scmp.eq.s32.totalorder %s19, 0
      %p138 = por %p136, %p137
      %p139 = scmp.ne.s32.totalorder %s127, %s128
      %p140 = scmp.eq.s32.totalorder %s20, 1
      %p141 = por %p139, %p140
      %p143 = scmp.ne.s32.totalorder %s128, %s142
      %p144 = scmp.eq.s32.totalorder %s20, 0
      %p145 = por %p143, %p144
      %s146 = ssub.s32 %s21, %s33
      %p147 = scmp.eq.s32.totalorder %s146, 0
      %s149 = sadd.s32 %s148, 1
      %s150 = scalar_select %p147, %s148, %s149
      %p153 = pneg %p147
      %p154 = scmp.eq.s32.totalorder %s14, 1
      %p155 = por %p153, %p154
      %p156 = scmp.ne.s32.totalorder %s148, %s151
      %p157 = scmp.eq.s32.totalorder %s14, 0
      %p158 = por %p156, %p157
      %p159 = scmp.ne.s32.totalorder %s148, %s151
      %p160 = scmp.eq.s32.totalorder %s19, 1
      %p161 = por %p159, %p160
      %p162 = scmp.ne.s32.totalorder %s151, %s152
      %p163 = scmp.eq.s32.totalorder %s19, 0
      %p164 = por %p162, %p163
      %p165 = scmp.ne.s32.totalorder %s151, %s152
      %p166 = scmp.eq.s32.totalorder %s20, 1
      %p167 = por %p165, %p166
      %p169 = scmp.ne.s32.totalorder %s152, %s168
      %p170 = scmp.eq.s32.totalorder %s20, 0
      %p171 = por %p169, %p170
      %p172 = scmp.le.s32.totalorder 1, %s14
      %p173 = scmp.lt.s32.totalorder %s14, 3
      %p174 = pnand %p172, %p173
      %p175 = pneg %p174
      // Predicated region
      $region9: #{ensemble_forward.1} parent=5 // pred_check
        _
      $region10: #{ensemble_forward.1} parent=5 // pred_check_branch
        %177 = sbr.rel (%p174) target = $region12
      $region11: #{ensemble_forward.1} parent=5 // pred_region
        %s178 = ssub.s32 %s14, 1
        // Predicated region
        $region13: #{ensemble_forward.1} parent=11 // pred_check
          %p179 = pneg %p75
        $region14: #{ensemble_forward.1} parent=11 // pred_check_branch
          %181 = sbr.rel (%p179) target = $region16
        $region15: #{ensemble_forward.1} parent=11 // pred_region
          _
        $region16: #{ensemble_forward.1} parent=11 // pred_fallthru
          _
        // Predicated region
        $region17: #{ensemble_forward.1} parent=11 // pred_check
          %p182 = pneg %p96
        $region18: #{ensemble_forward.1} parent=11 // pred_check_branch
          %184 = sbr.rel (%p182) target = $region20
        $region19: #{ensemble_forward.1} parent=11 // pred_region
          _
        $region20: #{ensemble_forward.1} parent=11 // pred_fallthru
          _
        // Predicated region
        $region21: #{ensemble_forward.1} parent=11 // pred_check
          %p185 = pneg %p117
        $region22: #{ensemble_forward.1} parent=11 // pred_check_branch
          %187 = sbr.rel (%p185) target = $region24
        $region23: #{ensemble_forward.1} parent=11 // pred_region
          _
        $region24: #{ensemble_forward.1} parent=11 // pred_fallthru
          _
        // Predicated region
        $region25: #{ensemble_forward.1} parent=11 // pred_check
          %p188 = pneg %p138
        $region26: #{ensemble_forward.1} parent=11 // pred_check_branch
          %190 = sbr.rel (%p188) target = $region28
        $region27: #{ensemble_forward.1} parent=11 // pred_region
          _
        $region28: #{ensemble_forward.1} parent=11 // pred_fallthru
          _
      $region12: #{ensemble_forward.1} parent=5 // pred_fallthru
        _
      %p191 = scmp.lt.s32.totalorder %s14, 2
      // Predicated region
      $region29: #{ensemble_forward.1} parent=5 // pred_check
        %p192 = pneg %p191
      $region30: #{ensemble_forward.1} parent=5 // pred_check_branch
        %194 = sbr.rel (%p192) target = $region32
      $region31: #{ensemble_forward.1} parent=5 // pred_region
        // Predicated region
        $region33: #{ensemble_forward.1} parent=31 // pred_check
          %p195 = pneg %p48
        $region34: #{ensemble_forward.1} parent=31 // pred_check_branch
          %197 = sbr.rel (%p195) target = $region36
        $region35: #{ensemble_forward.1} parent=31 // pred_region
          %p198 = scmp.lt.s32.totalorder %s21, 1
          %s199 = scalar_select %p198, %s21, 1
          %p200 = scmp.lt.s32.totalorder %s22, 0
          %s201 = scalar_select %p200, %s22, 0
          %s202 = smul.addr %s199, 8
          %s203 = sadd.s32 %s201, %s202
          %s204 = smul.addr %s203, 4
          %s205 = scalar_lea.vmem %s0, %s204
        $region36: #{ensemble_forward.1} parent=31 // pred_fallthru
          _
      $region32: #{ensemble_forward.1} parent=5 // pred_fallthru
        _
      %p206 = scmp.le.s32.totalorder 1, %s14
      %p207 = scmp.lt.s32.totalorder %s14, 3
      %p208 = pnand %p206, %p207
      %p209 = pneg %p208
      // Predicated region
      $region37: #{ensemble_forward.1} parent=5 // pred_check
        _
      $region38: #{ensemble_forward.1} parent=5 // pred_check_branch
        %211 = sbr.rel (%p208) target = $region40
      $region39: #{ensemble_forward.1} parent=5 // pred_region
        %s212 = ssub.s32 %s14, 1
        %p213 = scmp.lt.s32.totalorder %s23, 1
        %s214 = scalar_select %p213, %s23, 1
        %p215 = scmp.lt.s32.totalorder %s24, 0
        %s216 = scalar_select %p215, %s24, 0
        %s217 = smul.addr %s214, 8
        %s218 = sadd.s32 %s216, %s217
        %s219 = smul.addr %s218, 4
        %s220 = scalar_lea.vmem %s0, %s219
        %p221 = pneg %p54
        %p222 = pneg %p51
        %p223 = pneg %p75
        %p224 = pneg %p72
        %p225 = pneg %p96
        %p226 = pneg %p93
        %p227 = pneg %p117
        %p228 = pneg %p114
        %p229 = pneg %p138
        %p230 = pneg %p135
        %p231 = pneg %p164
        %p232 = pneg %p161
        %s233 = sand.u32 %s151, 1
        %s234 = scalar_lea.sflag [#allocation4], %s233
        %s235 = sand.u32 %s151, 1
        %s236 = scalar_lea.vmem [#allocation3], %s235
        %p237 = scmp.lt.s32.totalorder %s23, 1
        %s238 = scalar_select %p237, %s23, 1
        %p239 = scmp.lt.s32.totalorder %s24, 0
        %s240 = scalar_select %p239, %s24, 0
        %s241 = smul.addr %s238, 8
        %s242 = sadd.s32 %s240, %s241
        %s243 = smul.addr %s242, 4
        %s244 = scalar_lea.vmem %s0, %s243
        %p246 = scmp.eq.s32.totalorder %s24, 0
        // Predicated region
        $region41: #{ensemble_forward.1} parent=39 // pred_check
          %p247 = pneg %p246
        $region42: #{ensemble_forward.1} parent=39 // pred_check_branch
          %249 = sbr.rel (%p247) target = $region44
        $region43: #{ensemble_forward.1} parent=39 // pred_region
          %vm250 = vcmask 7168
          %251 = vst.msk [vmem:[#allocation2] sm:$0xff] %vm250, 0.0
          %252 = vst.msk [vmem:[#allocation2 + $0x8] sm:$0xff] %vm250, 0.0
          %253 = vst.msk [vmem:[#allocation2 + $0x10] sm:$0xff] %vm250, 0.0
          %254 = vst.msk [vmem:[#allocation2 + $0x18] sm:$0xff] %vm250, 0.0
        $region44: #{ensemble_forward.1} parent=39 // pred_fallthru
          _
        %v255 = vld [vmem:[%s1] sm:$0xf]
        %v256 = vld [vmem:[%s1 + $0x4] sm:$0xf]
        %v257 = vld [vmem:[%s1 + $0x8] sm:$0xf]
        %v258 = vld [vmem:[%s1 + $0xc] sm:$0xf]
        %v259 = vld [vmem:[%s1 + $0x10] sm:$0xf]
        %v260 = vld [vmem:[%s1 + $0x14] sm:$0xf]
        %v261 = vld [vmem:[%s1 + $0x18] sm:$0xf]
        %v262 = vld [vmem:[%s1 + $0x1c] sm:$0xf]
        %v263 = vld [vmem:[%s244] sm:$0xf]
        %v264 = vld [vmem:[%s244 + $0x4] sm:$0xf]
        %v265 = vld [vmem:[%s244 + $0x8] sm:$0xf]
        %v266 = vld [vmem:[%s244 + $0xc] sm:$0xf]
        %v267 = vld [vmem:[%s244 + $0x10] sm:$0xf]
        %v268 = vld [vmem:[%s244 + $0x14] sm:$0xf]
        %v269 = vld [vmem:[%s244 + $0x18] sm:$0xf]
        %v270 = vld [vmem:[%s244 + $0x1c] sm:$0xf]
        %v271 = vld [vmem:[%s2] sm:$0xff]
        %v272 = vld [vmem:[%s2 + $0x8] sm:$0xff]
        %v273 = vld [vmem:[%s2 + $0x10] sm:$0xff]
        %v274 = vld [vmem:[%s2 + $0x18] sm:$0xff]
        %v275 = vld [vmem:[%s2 + $0x20] sm:$0xff]
        %v276 = vld [vmem:[%s2 + $0x28] sm:$0xff]
        %v277 = vld [vmem:[%s2 + $0x30] sm:$0xff]
        %v278 = vld [vmem:[%s2 + $0x38] sm:$0xff]
        %280 = vset.pattern.permute.xlu0 0
        %281 = vperm.xlu0 %280, %v271
        %v282 = vpop.permute.xlu0 %281
        %285 = vset.pattern.permute.xlu0 0
        %286 = vperm.xlu0 %285, %v272
        %v287 = vpop.permute.xlu0 %286
        %290 = vset.pattern.permute.xlu0 0
        %291 = vperm.xlu0 %290, %v273
        %v292 = vpop.permute.xlu0 %291
        %295 = vset.pattern.permute.xlu0 0
        %296 = vperm.xlu0 %295, %v274
        %v297 = vpop.permute.xlu0 %296
        %300 = vset.pattern.permute.xlu0 0
        %301 = vperm.xlu0 %300, %v275
        %v302 = vpop.permute.xlu0 %301
        %305 = vset.pattern.permute.xlu0 0
        %306 = vperm.xlu0 %305, %v276
        %v307 = vpop.permute.xlu0 %306
        %310 = vset.pattern.permute.xlu0 0
        %311 = vperm.xlu0 %310, %v277
        %v312 = vpop.permute.xlu0 %311
        %315 = vset.pattern.permute.xlu0 0
        %316 = vperm.xlu0 %315, %v278
        %v317 = vpop.permute.xlu0 %316
        %v327 = vunpack.c.l.b16 %v255
        %v328 = vunpack.c.l.b16 %v256
        %v329 = vunpack.c.l.b16 %v257
        %v330 = vunpack.c.l.b16 %v258
        %v331 = vunpack.c.l.b16 %v259
        %v332 = vunpack.c.l.b16 %v260
        %v333 = vunpack.c.l.b16 %v261
        %v334 = vunpack.c.l.b16 %v262
        %v335 = vpack.c.b16 %v328, %v327
        %v336 = vpack.c.b16 %v330, %v329
        %v337 = vpack.c.b16 %v332, %v331
        %v338 = vpack.c.b16 %v334, %v333
        %v347 = vunpack.c.l.b16 %v263
        %v348 = vunpack.c.l.b16 %v264
        %v349 = vunpack.c.l.b16 %v265
        %v350 = vunpack.c.l.b16 %v266
        %v351 = vunpack.c.l.b16 %v267
        %v352 = vunpack.c.l.b16 %v268
        %v353 = vunpack.c.l.b16 %v269
        %v354 = vunpack.c.l.b16 %v270
        %v355 = vpack.c.b16 %v348, %v347
        %v356 = vpack.c.b16 %v350, %v349
        %v357 = vpack.c.b16 %v352, %v351
        %v358 = vpack.c.b16 %v354, %v353
        %vm363 = vcmask 523264
        %v365 = vsel %vm363, %v335, 0
        %v368 = vsel %vm363, %v336, 0
        %v371 = vsel %vm363, %v337, 0
        %v374 = vsel %vm363, %v338, 0
        %376 = vmatprep.subr.bf16.mxu0 0
        %377 = vmatpush1.bf16.msra.mxu0 %v355
        %378 = vmatprep.subr.bf16.mxu0 0
        %379 = vmatpush1.bf16.msra.mxu0 %v356
        %380 = vmatprep.subr.bf16.mxu0 0
        %381 = vmatpush1.bf16.msra.mxu0 %v357
        %382 = vmatprep.subr.bf16.mxu0 0
        %383 = vmatpush1.bf16.msra.mxu0 %v358
        %384 = vmatprep.subr.bf16.mxu0 0
        %385 = vmatpush1.bf16.msra.mxu0 0
        %386 = vmatprep.subr.bf16.mxu0 0
        %387 = vmatpush1.bf16.msra.mxu0 0
        %388 = vmatprep.subr.bf16.mxu0 0
        %389 = vmatpush1.bf16.msra.mxu0 0
        %390 = vmatprep.subr.bf16.mxu0 0
        %391 = vmatpush1.bf16.msra.mxu0 0
        %392 = vmatprep.subr.bf16.mxu0 0
        %393 = vmatpush1.bf16.msra.mxu0 0
        %394 = vmatprep.subr.bf16.mxu0 0
        %395 = vmatpush1.bf16.msra.mxu0 0
        %396 = vmatprep.subr.bf16.mxu0 0
        %397 = vmatpush1.bf16.msra.mxu0 0
        %398 = vmatprep.subr.bf16.mxu0 0
        %399 = vmatpush1.bf16.msra.mxu0 0
        %400 = vmatprep.subr.bf16.mxu0 0
        %401 = vmatpush1.bf16.msra.mxu0 0
        %402 = vmatprep.subr.bf16.mxu0 0
        %403 = vmatpush1.bf16.msra.mxu0 0
        %404 = vmatprep.subr.bf16.mxu0 0
        %405 = vmatpush1.bf16.msra.mxu0 0
        %406 = vmatprep.subr.bf16.mxu0 0
        %407 = vmatpush1.bf16.msra.mxu0 0
        %408 = vmatprep.mubr.bf16.mxu0 0
        %409 = vmatmul.mubr.bf16.gmra.mrb[0].mxu0 %v365
        %v410 = vpop.f32.mrb[0].mxu0
        %v411 = vadd.f32 %v282, %v410
        %v412 = vpop.f32.mrb[0].mxu0
        %v413 = vpop.f32.mrb[0].mxu0
        %v414 = vadd.f32 %v287, %v413
        %v415 = vpop.f32.mrb[0].mxu0
        %416 = vmatprep.mubr.bf16.mxu0 0
        %417 = vmatmul.mubr.bf16.gmra.mrb[0].mxu0 %v368
        %v418 = vpop.f32.mrb[0].mxu0
        %v419 = vadd.f32 %v292, %v418
        %v420 = vpop.f32.mrb[0].mxu0
        %v421 = vpop.f32.mrb[0].mxu0
        %v422 = vadd.f32 %v297, %v421
        %v423 = vpop.f32.mrb[0].mxu0
        %424 = vmatprep.mubr.bf16.mxu0 0
        %425 = vmatmul.mubr.bf16.gmra.mrb[0].mxu0 %v371
        %v426 = vpop.f32.mrb[0].mxu0
        %v427 = vadd.f32 %v302, %v426
        %v428 = vpop.f32.mrb[0].mxu0
        %v429 = vpop.f32.mrb[0].mxu0
        %v430 = vadd.f32 %v307, %v429
        %v431 = vpop.f32.mrb[0].mxu0
        %432 = vmatprep.mubr.bf16.mxu0 0
        %433 = vmatmul.mubr.bf16.gmra.mrb[0].mxu0 %v374
        %v434 = vpop.f32.mrb[0].mxu0
        %v435 = vadd.f32 %v312, %v434
        %v436 = vpop.f32.mrb[0].mxu0
        %v437 = vpop.f32.mrb[0].mxu0
        %v438 = vadd.f32 %v317, %v437
        %v439 = vpop.f32.mrb[0].mxu0
        %440 = vdwg.mxu0
        %v441 = vxor.u32 %v411, 2147483648
        %v442 = vxor.u32 %v414, 2147483648
        %v443 = vxor.u32 %v419, 2147483648
        %v444 = vxor.u32 %v422, 2147483648
        %v445 = vxor.u32 %v427, 2147483648
        %v446 = vxor.u32 %v430, 2147483648
        %v447 = vxor.u32 %v435, 2147483648
        %v448 = vxor.u32 %v438, 2147483648
        %v449 = vmul.f32 %v441, 1.442695
        %v450 = vpow.pop %v449
        %v451 = vmul.f32 %v442, 1.442695
        %v452 = vpow.pop %v451
        %v453 = vmul.f32 %v443, 1.442695
        %v454 = vpow.pop %v453
        %v455 = vmul.f32 %v444, 1.442695
        %v456 = vpow.pop %v455
        %v457 = vmul.f32 %v445, 1.442695
        %v458 = vpow.pop %v457
        %v459 = vmul.f32 %v446, 1.442695
        %v460 = vpow.pop %v459
        %v461 = vmul.f32 %v447, 1.442695
        %v462 = vpow.pop %v461
        %v463 = vmul.f32 %v448, 1.442695
        %v464 = vpow.pop %v463
        %v465 = vadd.f32 %v450, 1.0
        %v466 = vadd.f32 %v452, 1.0
        %v467 = vadd.f32 %v454, 1.0
        %v468 = vadd.f32 %v456, 1.0
        %v469 = vadd.f32 %v458, 1.0
        %v470 = vadd.f32 %v460, 1.0
        %v471 = vadd.f32 %v462, 1.0
        %v472 = vadd.f32 %v464, 1.0
        %v473 = vrcp.pop %v465
        %v474 = vmul.f32 1.0, %v473
        %v475 = vrcp.pop %v466
        %v476 = vmul.f32 1.0, %v475
        %v477 = vrcp.pop %v467
        %v478 = vmul.f32 1.0, %v477
        %v479 = vrcp.pop %v468
        %v480 = vmul.f32 1.0, %v479
        %v481 = vrcp.pop %v469
        %v482 = vmul.f32 1.0, %v481
        %v483 = vrcp.pop %v470
        %v484 = vmul.f32 1.0, %v483
        %v485 = vrcp.pop %v471
        %v486 = vmul.f32 1.0, %v485
        %v487 = vrcp.pop %v472
        %v488 = vmul.f32 1.0, %v487
        %v489 = vmul.f32 %v411, %v474
        %v490 = vmul.f32 %v414, %v476
        %v491 = vmul.f32 %v419, %v478
        %v492 = vmul.f32 %v422, %v480
        %v493 = vmul.f32 %v427, %v482
        %v494 = vmul.f32 %v430, %v484
        %v495 = vmul.f32 %v435, %v486
        %v496 = vmul.f32 %v438, %v488
        %v497 = vadd.f32 %v489, %v493
        %v498 = vadd.f32 %v490, %v494
        %v499 = vadd.f32 %v491, %v495
        %v500 = vadd.f32 %v492, %v496
        %v501 = vld [vmem:[#allocation2] sm:$0xff]
        %v502 = vld [vmem:[#allocation2 + $0x8] sm:$0xff]
        %v503 = vld [vmem:[#allocation2 + $0x10] sm:$0xff]
        %v504 = vld [vmem:[#allocation2 + $0x18] sm:$0xff]
        %505 = vadd.xlane.f32.xlu0 %v497
        %v506 = vpop.xlane.xlu0 %505
        %507 = vadd.xlane.f32.xlu0 %v498
        %v508 = vpop.xlane.xlu0 %507
        %509 = vadd.xlane.f32.xlu0 %v499
        %v510 = vpop.xlane.xlu0 %509
        %511 = vadd.xlane.f32.xlu0 %v500
        %v512 = vpop.xlane.xlu0 %511
        %v513 = vadd.f32 %v501, %v506
        %v514 = vadd.f32 %v502, %v508
        %v515 = vadd.f32 %v503, %v510
        %v516 = vadd.f32 %v504, %v512
        %vm517 = vcmask 7168
        %518 = vst.msk [vmem:[#allocation2] sm:$0xff] %vm517, %v513
        %519 = vst.msk [vmem:[#allocation2 + $0x8] sm:$0xff] %vm517, %v514
        %520 = vst.msk [vmem:[#allocation2 + $0x10] sm:$0xff] %vm517, %v515
        %521 = vst.msk [vmem:[#allocation2 + $0x18] sm:$0xff] %vm517, %v516
        // Predicated region
        $region45: #{ensemble_forward.1} parent=39 // pred_check
          %p522 = pneg %p246
        $region46: #{ensemble_forward.1} parent=39 // pred_check_branch
          %524 = sbr.rel (%p522) target = $region48
        $region47: #{ensemble_forward.1} parent=39 // pred_region
          %v525 = vld [vmem:[#allocation2] sm:$0xff]
          %v526 = vld [vmem:[#allocation2 + $0x8] sm:$0xff]
          %v527 = vld [vmem:[#allocation2 + $0x10] sm:$0xff]
          %v528 = vld [vmem:[#allocation2 + $0x18] sm:$0xff]
          %v529 = vld [vmem:[%s2] sm:$0xff]
          %v530 = vld [vmem:[%s2 + $0x8] sm:$0xff]
          %v531 = vld [vmem:[%s2 + $0x10] sm:$0xff]
          %v532 = vld [vmem:[%s2 + $0x18] sm:$0xff]
          %v533 = vld [vmem:[%s2 + $0x20] sm:$0xff]
          %v534 = vld [vmem:[%s2 + $0x28] sm:$0xff]
          %v535 = vld [vmem:[%s2 + $0x30] sm:$0xff]
          %v536 = vld [vmem:[%s2 + $0x38] sm:$0xff]
          %v537 = vxor.u32 %v529, 2147483648
          %v538 = vxor.u32 %v530, 2147483648
          %v539 = vxor.u32 %v531, 2147483648
          %v540 = vxor.u32 %v532, 2147483648
          %v541 = vxor.u32 %v533, 2147483648
          %v542 = vxor.u32 %v534, 2147483648
          %v543 = vxor.u32 %v535, 2147483648
          %v544 = vxor.u32 %v536, 2147483648
          %v545 = vmul.f32 %v537, 1.442695
          %v546 = vpow.pop %v545
          %v547 = vmul.f32 %v538, 1.442695
          %v548 = vpow.pop %v547
          %v549 = vmul.f32 %v539, 1.442695
          %v550 = vpow.pop %v549
          %v551 = vmul.f32 %v540, 1.442695
          %v552 = vpow.pop %v551
          %v553 = vmul.f32 %v541, 1.442695
          %v554 = vpow.pop %v553
          %v555 = vmul.f32 %v542, 1.442695
          %v556 = vpow.pop %v555
          %v557 = vmul.f32 %v543, 1.442695
          %v558 = vpow.pop %v557
          %v559 = vmul.f32 %v544, 1.442695
          %v560 = vpow.pop %v559
          %v561 = vadd.f32 %v546, 1.0
          %v562 = vadd.f32 %v548, 1.0
          %v563 = vadd.f32 %v550, 1.0
          %v564 = vadd.f32 %v552, 1.0
          %v565 = vadd.f32 %v554, 1.0
          %v566 = vadd.f32 %v556, 1.0
          %v567 = vadd.f32 %v558, 1.0
          %v568 = vadd.f32 %v560, 1.0
          %v569 = vrcp.pop %v561
          %v570 = vmul.f32 1.0, %v569
          %v571 = vrcp.pop %v562
          %v572 = vmul.f32 1.0, %v571
          %v573 = vrcp.pop %v563
          %v574 = vmul.f32 1.0, %v573
          %v575 = vrcp.pop %v564
          %v576 = vmul.f32 1.0, %v575
          %v577 = vrcp.pop %v565
          %v578 = vmul.f32 1.0, %v577
          %v579 = vrcp.pop %v566
          %v580 = vmul.f32 1.0, %v579
          %v581 = vrcp.pop %v567
          %v582 = vmul.f32 1.0, %v581
          %v583 = vrcp.pop %v568
          %v584 = vmul.f32 1.0, %v583
          %v585 = vmul.f32 %v529, %v570
          %v586 = vmul.f32 %v530, %v572
          %v587 = vmul.f32 %v531, %v574
          %v588 = vmul.f32 %v532, %v576
          %v589 = vmul.f32 %v533, %v578
          %v590 = vmul.f32 %v534, %v580
          %v591 = vmul.f32 %v535, %v582
          %v592 = vmul.f32 %v536, %v584
          %v593 = vadd.f32 %v585, %v589
          %v594 = vadd.f32 %v586, %v590
          %v595 = vadd.f32 %v587, %v591
          %v596 = vadd.f32 %v588, %v592
          %v597 = vmul.f32 %v593, 64.0
          %v598 = vmul.f32 %v594, 64.0
          %v599 = vmul.f32 %v595, 64.0
          %v600 = vmul.f32 %v596, 64.0
          %v601 = vsub.f32 %v525, %v597
          %v602 = vsub.f32 %v526, %v598
          %v603 = vsub.f32 %v527, %v599
          %v604 = vsub.f32 %v528, %v600
          %v605 = vmul.f32 %v601, 0.015625
          %v606 = vmul.f32 %v602, 0.015625
          %v607 = vmul.f32 %v603, 0.015625
          %v608 = vmul.f32 %v604, 0.015625
          %v609 = vld [vmem:[%s3] sm:$0xff]
          %v610 = vld [vmem:[%s3 + $0x8] sm:$0xff]
          %v611 = vld [vmem:[%s3 + $0x10] sm:$0xff]
          %v612 = vld [vmem:[%s3 + $0x18] sm:$0xff]
          %614 = vset.pattern.permute.xlu0 0
          %615 = vperm.xlu0 %614, %v605
          %v616 = vpop.permute.xlu0 %615
          %619 = vset.pattern.permute.xlu0 0
          %620 = vperm.xlu0 %619, %v606
          %v621 = vpop.permute.xlu0 %620
          %624 = vset.pattern.permute.xlu0 0
          %625 = vperm.xlu0 %624, %v607
          %v626 = vpop.permute.xlu0 %625
          %629 = vset.pattern.permute.xlu0 0
          %630 = vperm.xlu0 %629, %v608
          %v631 = vpop.permute.xlu0 %630
          %v633 = vmul.f32 %v616, %v609
          %v634 = vmul.f32 %v621, %v610
          %v635 = vmul.f32 %v626, %v611
          %v636 = vmul.f32 %v631, %v612
          %vm637 = vcmask 56320
          %v638 = vsel %vm637, %v633, 0.0
          %v639 = vsel %vm637, %v634, 0.0
          %v640 = vadd.f32 %v638, %v639
          %v641 = vsel %vm637, %v635, 0.0
          %v642 = vadd.f32 %v640, %v641
          %v643 = vsel %vm637, %v636, 0.0
          %v644 = vadd.f32 %v642, %v643
          %v645 = vrot.slane %v644, 4
          %v646 = vadd.f32 %v644, %v645
          %v647 = vrot.slane %v646, 2
          %v648 = vadd.f32 %v646, %v647
          %v649 = vrot.slane %v648, 1
          %v650 = vadd.f32 %v648, %v649
          %v651 = vld [vmem:[%s4] sm:$0x1]
          %v652 = vadd.f32 %v650, %v651
          %vm653 = vcmask 49152
          %654 = vst.msk [vmem:[%s236] sm:$0x1] %vm653, %v652
        $region48: #{ensemble_forward.1} parent=39 // pred_fallthru
          _
        %s655 = sand.u32 %s151, 1
        %s656 = scalar_lea.sflag [#allocation4], %s655
        %s657 = sand.u32 %s151, 1
        %s658 = scalar_lea.vmem [#allocation3], %s657
        // Predicated region
        $region49: #{ensemble_forward.1} parent=39 // pred_check
          %p659 = pneg %p161
        $region50: #{ensemble_forward.1} parent=39 // pred_check_branch
          %661 = sbr.rel (%p659) target = $region52
        $region51: #{ensemble_forward.1} parent=39 // pred_region
          %s663 = ssub.s32 16, 16
          %664 = vsyncadd %s656, %s663
          %s665 = smul.addr %s23, 16
          %s666 = scalar_lea.hbm %s5, %s665
          %s668 = sshll.u32 %s658, 4
          %s669 = int_to_ptr.vmem [resolvable:$true] %s668
          %671 = dma.vmem_to_hbm [thread:$0]  %s669, 16, %s666, %s656
        $region52: #{ensemble_forward.1} parent=39 // pred_fallthru
          _
      $region40: #{ensemble_forward.1} parent=5 // pred_fallthru
        _
      %p672 = scmp.le.s32.totalorder 2, %s14
      // Predicated region
      $region53: #{ensemble_forward.1} parent=5 // pred_check
        %p673 = pneg %p672
      $region54: #{ensemble_forward.1} parent=5 // pred_check_branch
        %675 = sbr.rel (%p673) target = $region56
      $region55: #{ensemble_forward.1} parent=5 // pred_region
        %s676 = ssub.s32 %s14, 2
        // Predicated region
        $region57: #{ensemble_forward.1} parent=55 // pred_check
          %p677 = pneg %p167
        $region58: #{ensemble_forward.1} parent=55 // pred_check_branch
          %679 = sbr.rel (%p677) target = $region60
        $region59: #{ensemble_forward.1} parent=55 // pred_region
          %s680 = sand.u32 %s152, 1
          %s681 = scalar_lea.sflag [#allocation4], %s680
          %s682 = sand.u32 %s152, 1
          %s683 = scalar_lea.vmem [#allocation3], %s682
          %684 = dma.done %s681, 16
        $region60: #{ensemble_forward.1} parent=55 // pred_fallthru
          _
      $region56: #{ensemble_forward.1} parent=5 // pred_fallthru
        _
    $region6: #{ensemble_forward.1} parent=1 // loop_footer
      %s18 = sadd.s32 1, %s14
    $region7: #{ensemble_forward.1} parent=1 // loop_footer_branch
      %13 = sbr.rel target = $region3
    $region8: #{ensemble_forward.1} parent=1 // loop_exit
      _
    %685 = vsyncpa [#allocation4], 1
    %s686 = scalar_lea.sflag [#allocation4], 1
    %687 = vsyncpa %s686, 1

</llo_original>
